<compile_context>
chip_gen: v5e
topology: v5e:2x2
jax: 0.10.0
libtpu: 0.0.40
codegen_flags: <defaults>
</compile_context>

<pallas_src>
import functools
import math

import jax
import jax.numpy as jnp
from jax.experimental import pallas as pl
from jax.experimental.pallas import tpu as pltpu


# ---------------------------------------------------------------------------
# Kernel 1: fused Q/K/V projection (module's q/k/v Linear + MHA in_proj).
# ---------------------------------------------------------------------------
def qkv_proj_kernel(x_ref, wq_ref, wk_ref, wv_ref,
                    wiq_ref, wik_ref, wiv_ref,
                    biq_ref, bik_ref, biv_ref,
                    q_ref, k_ref, v_ref):
    x = x_ref[...].astype(jnp.float32)                     # (N, C)

    def proj(w_outer_ref, w_inner_ref, b_ref):
        h = jnp.dot(x, w_outer_ref[...], preferred_element_type=jnp.float32)
        h = jnp.dot(h, w_inner_ref[...], preferred_element_type=jnp.float32)
        return h + b_ref[...]                              # (N, C) + (1, C)

    q_ref[...] = proj(wq_ref, wiq_ref, biq_ref).astype(q_ref.dtype)
    k_ref[...] = proj(wk_ref, wik_ref, bik_ref).astype(k_ref.dtype)
    v_ref[...] = proj(wv_ref, wiv_ref, biv_ref).astype(v_ref.dtype)


# ---------------------------------------------------------------------------
# Kernel 2: multi-head attention for one batch element (all heads per step).
# ---------------------------------------------------------------------------
def mha_kernel(q_ref, k_ref, v_ref, o_ref, *, scale):
    q = q_ref[...].astype(jnp.float32) * scale             # (H, S, Dh)
    k = k_ref[...].astype(jnp.float32)                     # (H, S, Dh)
    v = v_ref[...].astype(jnp.float32)                     # (H, S, Dh)

    s = jnp.einsum('hqd,hkd->hqk', q, k,
                   preferred_element_type=jnp.float32)     # (H, S, S)
    m = jnp.max(s, axis=-1, keepdims=True)
    e = jnp.exp(s - m)
    den = jnp.sum(e, axis=-1, keepdims=True)
    p = e * pl.reciprocal(den, approx=False)               # exact softmax
    o = jnp.einsum('hqk,hkd->hqd', p, v,
                   preferred_element_type=jnp.float32)     # (H, S, Dh)
    o_ref[...] = o.astype(o_ref.dtype)


# ---------------------------------------------------------------------------
# Kernel 3: out_proj + residual, then fc2(fc1(.)) + residual.
# ---------------------------------------------------------------------------
def out_mlp_kernel(a_ref, x_ref, wo_ref, bo_ref, w1_ref, w2_ref, y_ref):
    a = a_ref[...].astype(jnp.float32)                     # attention concat (N, C)
    x = x_ref[...].astype(jnp.float32)                     # layer input      (N, C)
    h = jnp.dot(a, wo_ref[...], preferred_element_type=jnp.float32)
    h = h + bo_ref[...] + x                                # MHA out_proj + residual
    m1 = jnp.dot(h, w1_ref[...], preferred_element_type=jnp.float32)
    y = jnp.dot(m1, w2_ref[...], preferred_element_type=jnp.float32) + h
    y_ref[...] = y.astype(y_ref.dtype)


# ---------------------------------------------------------------------------
# Wrapper
# ---------------------------------------------------------------------------
def transformer_layer_forward(x, params, num_heads):
    """x: (S, B, C) float32 -> (S, B, C) float32."""
    S, B, C = x.shape
    H = num_heads
    assert C % H == 0, f"embed dim {C} must be divisible by num_heads {H}"
    Dh = C // H
    N = S * B
    scale = 1.0 / math.sqrt(Dh)

    x2 = x.reshape(N, C)  # row index = s*B + b; embed dim stays on lanes

    def full2d(shape):
        return pl.BlockSpec(shape, lambda i: (0, 0))

    # ---- 1) fused QKV projections (single grid step, whole arrays in VMEM) ----
    q, k, v = pl.pallas_call(
        qkv_proj_kernel,
        out_shape=[jax.ShapeDtypeStruct((N, C), x.dtype)] * 3,
        grid=(1,),
        in_specs=[
            full2d((N, C)),
            full2d((C, C)), full2d((C, C)), full2d((C, C)),
            full2d((C, C)), full2d((C, C)), full2d((C, C)),
            full2d((1, C)), full2d((1, C)), full2d((1, C)),
        ],
        out_specs=[full2d((N, C))] * 3,
        compiler_params=pltpu.CompilerParams(
            dimension_semantics=("arbitrary",)),
    )(x2, params["wq"], params["wk"], params["wv"],
      params["wiq"], params["wik"], params["wiv"],
      params["biq"], params["bik"], params["biv"])

    # ---- split heads (cheap XLA glue): (N, C) -> (B*H, S, Dh) ----
    def to_heads(t):
        return t.reshape(S, B, H, Dh).transpose(1, 2, 0, 3).reshape(B * H, S, Dh)

    qh, kh, vh = to_heads(q), to_heads(k), to_heads(v)

    # ---- 2) attention, grid over batch (parallel -> megacore on v7x) ----
    attn_bytes = 4 * (4 * B * H * S * Dh)          # read q,k,v + write o
    attn_flops = 4 * B * H * S * S * Dh            # two matmuls
    o_heads = pl.pallas_call(
        functools.partial(mha_kernel, scale=scale),
        out_shape=jax.ShapeDtypeStruct((B * H, S, Dh), x.dtype),
        grid=(B,),
        in_specs=[pl.BlockSpec((H, S, Dh), lambda b: (b, 0, 0))] * 3,
        out_specs=pl.BlockSpec((H, S, Dh), lambda b: (b, 0, 0)),
        compiler_params=pltpu.CompilerParams(
            dimension_semantics=("parallel",)),
        cost_estimate=pl.CostEstimate(
            flops=attn_flops,
            transcendentals=B * H * S * S,
            bytes_accessed=attn_bytes),
    )(qh, kh, vh)

    # ---- merge heads: (B*H, S, Dh) -> (N, C) ----
    attn = o_heads.reshape(B, H, S, Dh).transpose(2, 0, 1, 3).reshape(N, C)

    # ---- 3) out_proj + residual + MLP + residual (single grid step) ----
    y = pl.pallas_call(
        out_mlp_kernel,
        out_shape=jax.ShapeDtypeStruct((N, C), x.dtype),
        grid=(1,),
        in_specs=[full2d((N, C)), full2d((N, C)),
                  full2d((C, C)), full2d((1, C)),
                  full2d((C, C)), full2d((C, C))],
        out_specs=full2d((N, C)),
        compiler_params=pltpu.CompilerParams(
            dimension_semantics=("arbitrary",)),
    )(attn, x2, params["wo"], params["bo"], params["w1"], params["w2"])

    return y.reshape(S, B, C)


# ---------------------------------------------------------------------------
# Pure-JAX reference (mirrors PyTorch TransformerLayer.forward exactly)
# ---------------------------------------------------------------------------
def transformer_layer_reference(x, params, num_heads):
    S, B, C = x.shape
    H = num_heads
    Dh = C // H
    scale = 1.0 / math.sqrt(Dh)
    hp = jax.lax.Precision.HIGHEST

    def mm(a, b):
        return jnp.matmul(a, b, precision=hp)

    q = mm(mm(x, params["wq"]), params["wiq"]) + params["biq"]
    k = mm(mm(x, params["wk"]), params["wik"]) + params["bik"]
    v = mm(mm(x, params["wv"]), params["wiv"]) + params["biv"]

    qh = q.reshape(S, B, H, Dh).transpose(1, 2, 0, 3) * scale   # (B,H,S,Dh)
    kh = k.reshape(S, B, H, Dh).transpose(1, 2, 0, 3)
    vh = v.reshape(S, B, H, Dh).transpose(1, 2, 0, 3)

    s = jnp.einsum('bhqd,bhkd->bhqk', qh, kh, precision=hp)
    p = jax.nn.softmax(s, axis=-1)
    o = jnp.einsum('bhqk,bhkd->bhqd', p, vh, precision=hp)
    o = o.transpose(2, 0, 1, 3).reshape(S, B, C)

    h = mm(o, params["wo"]) + params["bo"] + x
    return mm(mm(h, params["w1"]), params["w2"]) + h


def init_params(key, c):
    keys = jax.random.split(key, 13)

    def w(k):
        return jax.random.normal(k, (c, c), dtype=jnp.float32) / math.sqrt(c)

    def b(k):
        return jax.random.normal(k, (1, c), dtype=jnp.float32) * 0.02

    return {
        "wq": w(keys[0]), "wk": w(keys[1]), "wv": w(keys[2]),      # q/k/v Linear (no bias)
        "wiq": w(keys[3]), "wik": w(keys[4]), "wiv": w(keys[5]),   # MHA in_proj weights
        "biq": b(keys[6]), "bik": b(keys[7]), "biv": b(keys[8]),   # MHA in_proj bias
        "wo": w(keys[9]), "bo": b(keys[10]),                       # MHA out_proj
        "w1": w(keys[11]), "w2": w(keys[12]),                      # fc1 / fc2 (no bias)
    }


if __name__ == "__main__":
    S, B, C, H = 8, 2, 32, 4   # seq=8, batch=2, hidden=32, 4 heads
    key = jax.random.PRNGKey(0)
    kx, kp = jax.random.split(key)
    x = jax.random.normal(kx, (S, B, C), dtype=jnp.float32)
    params = init_params(kp, C)

    out = transformer_layer_forward(x, params, num_heads=H)
    out = jax.block_until_ready(out)

    ref = transformer_layer_reference(x, params, num_heads=H)
    assert out.shape == (S, B, C)
    assert jnp.allclose(out, ref, atol=5e-4, rtol=5e-4), \
        float(jnp.max(jnp.abs(out - ref)))

    print("KERNEL_OK")
</pallas_src>

<mosaic_0001>
module attributes {stable_mosaic.version = 11 : i64} {
  func.func @qkv_proj_kernel(%arg0: i32, %arg1: memref<16x32xf32, #tpu.memory_space<vmem>>, %arg2: memref<32x32xf32, #tpu.memory_space<vmem>>, %arg3: memref<32x32xf32, #tpu.memory_space<vmem>>, %arg4: memref<32x32xf32, #tpu.memory_space<vmem>>, %arg5: memref<32x32xf32, #tpu.memory_space<vmem>>, %arg6: memref<32x32xf32, #tpu.memory_space<vmem>>, %arg7: memref<32x32xf32, #tpu.memory_space<vmem>>, %arg8: memref<1x32xf32, #tpu.memory_space<vmem>>, %arg9: memref<1x32xf32, #tpu.memory_space<vmem>>, %arg10: memref<1x32xf32, #tpu.memory_space<vmem>>, %arg11: memref<16x32xf32, #tpu.memory_space<vmem>>, %arg12: memref<16x32xf32, #tpu.memory_space<vmem>>, %arg13: memref<16x32xf32, #tpu.memory_space<vmem>>) attributes {dimension_semantics = [#tpu.dimension_semantics<arbitrary>], iteration_bounds = array<i64: 1>, scalar_prefetch = 0 : i64, scratch_operands = 0 : i64, tpu.core_type = #tpu.core_type<tc>, window_params = [{pipeline_mode = #tpu.pipeline_mode<synchronous>, transform_indices = @transform_0, window_bounds = array<i64: 16, 32>}, {pipeline_mode = #tpu.pipeline_mode<synchronous>, transform_indices = @transform_1, window_bounds = array<i64: 32, 32>}, {pipeline_mode = #tpu.pipeline_mode<synchronous>, transform_indices = @transform_2, window_bounds = array<i64: 32, 32>}, {pipeline_mode = #tpu.pipeline_mode<synchronous>, transform_indices = @transform_3, window_bounds = array<i64: 32, 32>}, {pipeline_mode = #tpu.pipeline_mode<synchronous>, transform_indices = @transform_4, window_bounds = array<i64: 32, 32>}, {pipeline_mode = #tpu.pipeline_mode<synchronous>, transform_indices = @transform_5, window_bounds = array<i64: 32, 32>}, {pipeline_mode = #tpu.pipeline_mode<synchronous>, transform_indices = @transform_6, window_bounds = array<i64: 32, 32>}, {pipeline_mode = #tpu.pipeline_mode<synchronous>, transform_indices = @transform_7, window_bounds = array<i64: 1, 32>}, {pipeline_mode = #tpu.pipeline_mode<synchronous>, transform_indices = @transform_8, window_bounds = array<i64: 1, 32>}, {pipeline_mode = #tpu.pipeline_mode<synchronous>, transform_indices = @transform_9, window_bounds = array<i64: 1, 32>}, {pipeline_mode = #tpu.pipeline_mode<synchronous>, transform_indices = @transform_10, window_bounds = array<i64: 16, 32>}, {pipeline_mode = #tpu.pipeline_mode<synchronous>, transform_indices = @transform_11, window_bounds = array<i64: 16, 32>}, {pipeline_mode = #tpu.pipeline_mode<synchronous>, transform_indices = @transform_12, window_bounds = array<i64: 16, 32>}]} {
    %c0 = arith.constant 0 : index
    %c0_0 = arith.constant 0 : index
    %0 = vector.load %arg1[%c0, %c0_0] : memref<16x32xf32, #tpu.memory_space<vmem>>, vector<16x32xf32>
    %c0_1 = arith.constant 0 : index
    %c0_2 = arith.constant 0 : index
    %1 = vector.load %arg2[%c0_1, %c0_2] : memref<32x32xf32, #tpu.memory_space<vmem>>, vector<32x32xf32>
    %cst = arith.constant dense<0.000000e+00> : vector<16x32xf32>
    %2 = tpu.matmul %0, %1, %cst {dimension_numbers = #tpu.dot_dimension_numbers<[1], [0], [0], [1], [0, 0, 1, 1], [], []>} : vector<16x32xf32>, vector<32x32xf32>, vector<16x32xf32> -> vector<16x32xf32>
    %c0_3 = arith.constant 0 : index
    %c0_4 = arith.constant 0 : index
    %3 = vector.load %arg5[%c0_3, %c0_4] : memref<32x32xf32, #tpu.memory_space<vmem>>, vector<32x32xf32>
    %cst_5 = arith.constant dense<0.000000e+00> : vector<16x32xf32>
    %4 = tpu.matmul %2, %3, %cst_5 {dimension_numbers = #tpu.dot_dimension_numbers<[1], [0], [0], [1], [0, 0, 1, 1], [], []>} : vector<16x32xf32>, vector<32x32xf32>, vector<16x32xf32> -> vector<16x32xf32>
    %c0_6 = arith.constant 0 : index
    %c0_7 = arith.constant 0 : index
    %5 = vector.load %arg8[%c0_6, %c0_7] : memref<1x32xf32, #tpu.memory_space<vmem>>, vector<1x32xf32>
    %6 = vector.broadcast %5 : vector<1x32xf32> to vector<16x32xf32>
    %7 = arith.addf %4, %6 : vector<16x32xf32>
    %c0_8 = arith.constant 0 : index
    %c0_9 = arith.constant 0 : index
    %8 = vector.load %arg11[%c0_8, %c0_9] : memref<16x32xf32, #tpu.memory_space<vmem>>, vector<16x32xf32>
    tpu.vector_store %arg11[%c0_8, %c0_9], %7 {strides = array<i32>} : memref<16x32xf32, #tpu.memory_space<vmem>>, vector<16x32xf32>,
    %c0_10 = arith.constant 0 : index
    %c0_11 = arith.constant 0 : index
    %9 = vector.load %arg3[%c0_10, %c0_11] : memref<32x32xf32, #tpu.memory_space<vmem>>, vector<32x32xf32>
    %cst_12 = arith.constant dense<0.000000e+00> : vector<16x32xf32>
    %10 = tpu.matmul %0, %9, %cst_12 {dimension_numbers = #tpu.dot_dimension_numbers<[1], [0], [0], [1], [0, 0, 1, 1], [], []>} : vector<16x32xf32>, vector<32x32xf32>, vector<16x32xf32> -> vector<16x32xf32>
    %c0_13 = arith.constant 0 : index
    %c0_14 = arith.constant 0 : index
    %11 = vector.load %arg6[%c0_13, %c0_14] : memref<32x32xf32, #tpu.memory_space<vmem>>, vector<32x32xf32>
    %cst_15 = arith.constant dense<0.000000e+00> : vector<16x32xf32>
    %12 = tpu.matmul %10, %11, %cst_15 {dimension_numbers = #tpu.dot_dimension_numbers<[1], [0], [0], [1], [0, 0, 1, 1], [], []>} : vector<16x32xf32>, vector<32x32xf32>, vector<16x32xf32> -> vector<16x32xf32>
    %c0_16 = arith.constant 0 : index
    %c0_17 = arith.constant 0 : index
    %13 = vector.load %arg9[%c0_16, %c0_17] : memref<1x32xf32, #tpu.memory_space<vmem>>, vector<1x32xf32>
    %14 = vector.broadcast %13 : vector<1x32xf32> to vector<16x32xf32>
    %15 = arith.addf %12, %14 : vector<16x32xf32>
    %c0_18 = arith.constant 0 : index
    %c0_19 = arith.constant 0 : index
    %16 = vector.load %arg12[%c0_18, %c0_19] : memref<16x32xf32, #tpu.memory_space<vmem>>, vector<16x32xf32>
    tpu.vector_store %arg12[%c0_18, %c0_19], %15 {strides = array<i32>} : memref<16x32xf32, #tpu.memory_space<vmem>>, vector<16x32xf32>,
    %c0_20 = arith.constant 0 : index
    %c0_21 = arith.constant 0 : index
    %17 = vector.load %arg4[%c0_20, %c0_21] : memref<32x32xf32, #tpu.memory_space<vmem>>, vector<32x32xf32>
    %cst_22 = arith.constant dense<0.000000e+00> : vector<16x32xf32>
    %18 = tpu.matmul %0, %17, %cst_22 {dimension_numbers = #tpu.dot_dimension_numbers<[1], [0], [0], [1], [0, 0, 1, 1], [], []>} : vector<16x32xf32>, vector<32x32xf32>, vector<16x32xf32> -> vector<16x32xf32>
    %c0_23 = arith.constant 0 : index
    %c0_24 = arith.constant 0 : index
    %19 = vector.load %arg7[%c0_23, %c0_24] : memref<32x32xf32, #tpu.memory_space<vmem>>, vector<32x32xf32>
    %cst_25 = arith.constant dense<0.000000e+00> : vector<16x32xf32>
    %20 = tpu.matmul %18, %19, %cst_25 {dimension_numbers = #tpu.dot_dimension_numbers<[1], [0], [0], [1], [0, 0, 1, 1], [], []>} : vector<16x32xf32>, vector<32x32xf32>, vector<16x32xf32> -> vector<16x32xf32>
    %c0_26 = arith.constant 0 : index
    %c0_27 = arith.constant 0 : index
    %21 = vector.load %arg10[%c0_26, %c0_27] : memref<1x32xf32, #tpu.memory_space<vmem>>, vector<1x32xf32>
    %22 = vector.broadcast %21 : vector<1x32xf32> to vector<16x32xf32>
    %23 = arith.addf %20, %22 : vector<16x32xf32>
    %c0_28 = arith.constant 0 : index
    %c0_29 = arith.constant 0 : index
    %24 = vector.load %arg13[%c0_28, %c0_29] : memref<16x32xf32, #tpu.memory_space<vmem>>, vector<16x32xf32>
    tpu.vector_store %arg13[%c0_28, %c0_29], %23 {strides = array<i32>} : memref<16x32xf32, #tpu.memory_space<vmem>>, vector<16x32xf32>,
    return
  }
  func.func @transform_0(%arg0: i32) -> (i32, i32) {
    %c0_i32 = arith.constant 0 : i32
    %c0_i32_0 = arith.constant 0 : i32
    %c0_i32_1 = arith.constant 0 : i32
    return %c0_i32, %c0_i32_0 : i32, i32
  }
  func.func @transform_1(%arg0: i32) -> (i32, i32) {
    %c0_i32 = arith.constant 0 : i32
    %c0_i32_0 = arith.constant 0 : i32
    %c0_i32_1 = arith.constant 0 : i32
    return %c0_i32, %c0_i32_0 : i32, i32
  }
  func.func @transform_2(%arg0: i32) -> (i32, i32) {
    %c0_i32 = arith.constant 0 : i32
    %c0_i32_0 = arith.constant 0 : i32
    %c0_i32_1 = arith.constant 0 : i32
    return %c0_i32, %c0_i32_0 : i32, i32
  }
  func.func @transform_3(%arg0: i32) -> (i32, i32) {
    %c0_i32 = arith.constant 0 : i32
    %c0_i32_0 = arith.constant 0 : i32
    %c0_i32_1 = arith.constant 0 : i32
    return %c0_i32, %c0_i32_0 : i32, i32
  }
  func.func @transform_4(%arg0: i32) -> (i32, i32) {
    %c0_i32 = arith.constant 0 : i32
    %c0_i32_0 = arith.constant 0 : i32
    %c0_i32_1 = arith.constant 0 : i32
    return %c0_i32, %c0_i32_0 : i32, i32
  }
  func.func @transform_5(%arg0: i32) -> (i32, i32) {
    %c0_i32 = arith.constant 0 : i32
    %c0_i32_0 = arith.constant 0 : i32
    %c0_i32_1 = arith.constant 0 : i32
    return %c0_i32, %c0_i32_0 : i32, i32
  }
  func.func @transform_6(%arg0: i32) -> (i32, i32) {
    %c0_i32 = arith.constant 0 : i32
    %c0_i32_0 = arith.constant 0 : i32
    %c0_i32_1 = arith.constant 0 : i32
    return %c0_i32, %c0_i32_0 : i32, i32
  }
  func.func @transform_7(%arg0: i32) -> (i32, i32) {
    %c0_i32 = arith.constant 0 : i32
    %c0_i32_0 = arith.constant 0 : i32
    %c0_i32_1 = arith.constant 0 : i32
    return %c0_i32, %c0_i32_0 : i32, i32
  }
  func.func @transform_8(%arg0: i32) -> (i32, i32) {
    %c0_i32 = arith.constant 0 : i32
    %c0_i32_0 = arith.constant 0 : i32
    %c0_i32_1 = arith.constant 0 : i32
    return %c0_i32, %c0_i32_0 : i32, i32
  }
  func.func @transform_9(%arg0: i32) -> (i32, i32) {
    %c0_i32 = arith.constant 0 : i32
    %c0_i32_0 = arith.constant 0 : i32
    %c0_i32_1 = arith.constant 0 : i32
    return %c0_i32, %c0_i32_0 : i32, i32
  }
  func.func @transform_10(%arg0: i32) -> (i32, i32) {
    %c0_i32 = arith.constant 0 : i32
    %c0_i32_0 = arith.constant 0 : i32
    %c0_i32_1 = arith.constant 0 : i32
    return %c0_i32, %c0_i32_0 : i32, i32
  }
  func.func @transform_11(%arg0: i32) -> (i32, i32) {
    %c0_i32 = arith.constant 0 : i32
    %c0_i32_0 = arith.constant 0 : i32
    %c0_i32_1 = arith.constant 0 : i32
    return %c0_i32, %c0_i32_0 : i32, i32
  }
  func.func @transform_12(%arg0: i32) -> (i32, i32) {
    %c0_i32 = arith.constant 0 : i32
    %c0_i32_0 = arith.constant 0 : i32
    %c0_i32_1 = arith.constant 0 : i32
    return %c0_i32, %c0_i32_0 : i32, i32
  }
}

</mosaic_0001>

<llo_original>
// kernel: tpu_custom_call.1
$region0: #{tpu_custom_call.1}
  #allocation0 [shape = 'u32[]', space=smem, size = 0x4, offset = 0x4, fixed_abs, tag = 'smem constant byte address 0x4 - core index']
  #allocation1 [shape = 'u32[72,128]{1,0:T(1,128)}', space=vmem, size = 0x9000, scoped, tag = 'internal scratch']
  %s0 = inlined_call_operand.hbm [shape: f32[16,32], index: 0, kind: input, shape index: {}]
  %s1 = inlined_call_operand.hbm [shape: f32[32,32], index: 1, kind: input, shape index: {}]
  %s2 = inlined_call_operand.hbm [shape: f32[32,32], index: 2, kind: input, shape index: {}]
  %s3 = inlined_call_operand.hbm [shape: f32[32,32], index: 3, kind: input, shape index: {}]
  %s4 = inlined_call_operand.hbm [shape: f32[32,32], index: 4, kind: input, shape index: {}]
  %s5 = inlined_call_operand.hbm [shape: f32[32,32], index: 5, kind: input, shape index: {}]
  %s6 = inlined_call_operand.hbm [shape: f32[32,32], index: 6, kind: input, shape index: {}]
  %s7 = inlined_call_operand.vmem [shape: f32[1,32], index: 7, kind: input, shape index: {}]
  %s8 = inlined_call_operand.vmem [shape: f32[1,32], index: 8, kind: input, shape index: {}]
  %s9 = inlined_call_operand.vmem [shape: f32[1,32], index: 9, kind: input, shape index: {}]
  %s10 = inlined_call_operand.hbm [shape: f32[16,32], index: 10, kind: output, shape index: {0}]
  %s11 = inlined_call_operand.hbm [shape: f32[16,32], index: 11, kind: output, shape index: {1}]
  %s12 = inlined_call_operand.hbm [shape: f32[16,32], index: 12, kind: output, shape index: {2}]
  %13 = xla_tuple %s10, %s11, %s12
  %s14 = sld [smem:[#allocation0]]
  $region94: #{tpu_custom_call.1} parent=0
    _
  %s16 = ssub.s32 1, %s14
  %s17 = scalar_select 0, %s16, %s14
  $region1: #{tpu_custom_call.1} parent=0
    #allocation2 [shape = 'u8[8192]{0}', space=vmem, size = 0x2000, scoped, tag = 'input window, operand 0, single buffered']
    #allocation3 [shape = 's32[1]{0}', space=sflag, size = 0x4, scoped, tag = 'scoped memory for tpu_custom_call.1']
    #allocation4 [shape = 's32[1]{0}', space=sflag, size = 0x4, scoped, tag = 'scoped memory for tpu_custom_call.1']
    #allocation5 [shape = 'u8[16384]{0}', space=vmem, size = 0x4000, scoped, tag = 'input window, operand 1, single buffered']
    #allocation6 [shape = 's32[1]{0}', space=sflag, size = 0x4, scoped, tag = 'scoped memory for tpu_custom_call.1']
    #allocation7 [shape = 'u8[16384]{0}', space=vmem, size = 0x4000, scoped, tag = 'input window, operand 2, single buffered']
    #allocation8 [shape = 'u8[16384]{0}', space=vmem, size = 0x4000, scoped, tag = 'input window, operand 3, single buffered']
    #allocation9 [shape = 's32[1]{0}', space=sflag, size = 0x4, scoped, tag = 'scoped memory for tpu_custom_call.1']
    #allocation10 [shape = 'u8[16384]{0}', space=vmem, size = 0x4000, scoped, tag = 'input window, operand 4, single buffered']
    #allocation11 [shape = 'u8[16384]{0}', space=vmem, size = 0x4000, scoped, tag = 'input window, operand 5, single buffered']
    #allocation12 [shape = 's32[1]{0}', space=sflag, size = 0x4, scoped, tag = 'scoped memory for tpu_custom_call.1']
    #allocation13 [shape = 'u8[16384]{0}', space=vmem, size = 0x4000, scoped, tag = 'input window, operand 6, single buffered']
    #allocation14 [shape = 'u8[8192]{0}', space=vmem, size = 0x2000, scoped, tag = 'output window, operand 0, single buffered']
    #allocation15 [shape = 'u8[8192]{0}', space=vmem, size = 0x2000, scoped, tag = 'output window, operand 1, single buffered']
    #allocation16 [shape = 's32[1]{0}', space=sflag, size = 0x4, scoped, tag = 'scoped memory for tpu_custom_call.1']
    #allocation17 [shape = 'u8[8192]{0}', space=vmem, size = 0x2000, scoped, tag = 'output window, operand 2, single buffered']
    %18 = vsyncpa [#allocation3], 0
    %19 = vsyncpa [#allocation6], 0
    %20 = vsyncpa [#allocation9], 0
    %21 = vsyncpa [#allocation12], 0
    %22 = vsyncpa [#allocation4], 0
    %23 = vsyncpa [#allocation16], 0
    // Predicated region
    $region2: #{tpu_custom_call.1} parent=1 // pred_check
      _
    $region3: #{tpu_custom_call.1} parent=1 // pred_check_branch
      %25 = sbr.rel (0) target = $region5
    $region4: #{tpu_custom_call.1} parent=1 // pred_region
      %27 = vsyncadd [#allocation3], 0
      %s28 = sshll.u32 %s0, 4
      %s29 = int_to_ptr.hbm [resolvable:$true] %s28
      %s30 = sshll.u32 [#allocation2], 4
      %s31 = int_to_ptr.vmem [resolvable:$true] %s30
      %36 = dma.hbm_to_vmem [thread:$0]  %s29, 256, %s31, [#allocation3], 128, 128, 8
    $region5: #{tpu_custom_call.1} parent=1 // pred_fallthru
      _
    // Predicated region
    $region6: #{tpu_custom_call.1} parent=1 // pred_check
      _
    $region7: #{tpu_custom_call.1} parent=1 // pred_check_branch
      %38 = sbr.rel (0) target = $region9
    $region8: #{tpu_custom_call.1} parent=1 // pred_region
      %40 = vsyncadd [#allocation6], 0
      %s41 = sshll.u32 %s1, 4
      %s42 = int_to_ptr.hbm [resolvable:$true] %s41
      %s43 = sshll.u32 [#allocation5], 4
      %s44 = int_to_ptr.vmem [resolvable:$true] %s43
      %49 = dma.hbm_to_vmem [thread:$0]  %s42, 512, %s44, [#allocation6], 128, 128, 8
    $region9: #{tpu_custom_call.1} parent=1 // pred_fallthru
      _
    // Predicated region
    $region10: #{tpu_custom_call.1} parent=1 // pred_check
      _
    $region11: #{tpu_custom_call.1} parent=1 // pred_check_branch
      %51 = sbr.rel (0) target = $region13
    $region12: #{tpu_custom_call.1} parent=1 // pred_region
      %53 = vsyncadd [#allocation6], 0
      %s54 = sshll.u32 %s2, 4
      %s55 = int_to_ptr.hbm [resolvable:$true] %s54
      %s56 = sshll.u32 [#allocation7], 4
      %s57 = int_to_ptr.vmem [resolvable:$true] %s56
      %62 = dma.hbm_to_vmem [thread:$0]  %s55, 512, %s57, [#allocation6], 128, 128, 8
    $region13: #{tpu_custom_call.1} parent=1 // pred_fallthru
      _
    // Predicated region
    $region14: #{tpu_custom_call.1} parent=1 // pred_check
      _
    $region15: #{tpu_custom_call.1} parent=1 // pred_check_branch
      %64 = sbr.rel (0) target = $region17
    $region16: #{tpu_custom_call.1} parent=1 // pred_region
      %66 = vsyncadd [#allocation9], 0
      %s67 = sshll.u32 %s3, 4
      %s68 = int_to_ptr.hbm [resolvable:$true] %s67
      %s69 = sshll.u32 [#allocation8], 4
      %s70 = int_to_ptr.vmem [resolvable:$true] %s69
      %75 = dma.hbm_to_vmem [thread:$0]  %s68, 512, %s70, [#allocation9], 128, 128, 8
    $region17: #{tpu_custom_call.1} parent=1 // pred_fallthru
      _
    // Predicated region
    $region18: #{tpu_custom_call.1} parent=1 // pred_check
      _
    $region19: #{tpu_custom_call.1} parent=1 // pred_check_branch
      %77 = sbr.rel (0) target = $region21
    $region20: #{tpu_custom_call.1} parent=1 // pred_region
      %79 = vsyncadd [#allocation9], 0
      %s80 = sshll.u32 %s4, 4
      %s81 = int_to_ptr.hbm [resolvable:$true] %s80
      %s82 = sshll.u32 [#allocation10], 4
      %s83 = int_to_ptr.vmem [resolvable:$true] %s82
      %88 = dma.hbm_to_vmem [thread:$0]  %s81, 512, %s83, [#allocation9], 128, 128, 8
    $region21: #{tpu_custom_call.1} parent=1 // pred_fallthru
      _
    // Predicated region
    $region22: #{tpu_custom_call.1} parent=1 // pred_check
      _
    $region23: #{tpu_custom_call.1} parent=1 // pred_check_branch
      %90 = sbr.rel (0) target = $region25
    $region24: #{tpu_custom_call.1} parent=1 // pred_region
      %92 = vsyncadd [#allocation12], 0
      %s93 = sshll.u32 %s5, 4
      %s94 = int_to_ptr.hbm [resolvable:$true] %s93
      %s95 = sshll.u32 [#allocation11], 4
      %s96 = int_to_ptr.vmem [resolvable:$true] %s95
      %101 = dma.hbm_to_vmem [thread:$0]  %s94, 512, %s96, [#allocation12], 128, 128, 8
    $region25: #{tpu_custom_call.1} parent=1 // pred_fallthru
      _
    // Predicated region
    $region26: #{tpu_custom_call.1} parent=1 // pred_check
      _
    $region27: #{tpu_custom_call.1} parent=1 // pred_check_branch
      %103 = sbr.rel (0) target = $region29
    $region28: #{tpu_custom_call.1} parent=1 // pred_region
      %105 = vsyncadd [#allocation12], 0
      %s106 = sshll.u32 %s6, 4
      %s107 = int_to_ptr.hbm [resolvable:$true] %s106
      %s108 = sshll.u32 [#allocation13], 4
      %s109 = int_to_ptr.vmem [resolvable:$true] %s108
      %114 = dma.hbm_to_vmem [thread:$0]  %s107, 512, %s109, [#allocation12], 128, 128, 8
    $region29: #{tpu_custom_call.1} parent=1 // pred_fallthru
      _
    // Predicated region
    $region30: #{tpu_custom_call.1} parent=1 // pred_check
      _
    $region31: #{tpu_custom_call.1} parent=1 // pred_check_branch
      %116 = sbr.rel (0) target = $region33
    $region32: #{tpu_custom_call.1} parent=1 // pred_region
      _
    $region33: #{tpu_custom_call.1} parent=1 // pred_fallthru
      _
    // Predicated region
    $region34: #{tpu_custom_call.1} parent=1 // pred_check
      _
    $region35: #{tpu_custom_call.1} parent=1 // pred_check_branch
      %118 = sbr.rel (0) target = $region37
    $region36: #{tpu_custom_call.1} parent=1 // pred_region
      _
    $region37: #{tpu_custom_call.1} parent=1 // pred_fallthru
      _
    // Predicated region
    $region38: #{tpu_custom_call.1} parent=1 // pred_check
      _
    $region39: #{tpu_custom_call.1} parent=1 // pred_check_branch
      %120 = sbr.rel (0) target = $region41
    $region40: #{tpu_custom_call.1} parent=1 // pred_region
      _
    $region41: #{tpu_custom_call.1} parent=1 // pred_fallthru
      _
    // Predicated region
    $region42: #{tpu_custom_call.1} parent=1 // pred_check
      _
    $region43: #{tpu_custom_call.1} parent=1 // pred_check_branch
      %122 = sbr.rel (0) target = $region45
    $region44: #{tpu_custom_call.1} parent=1 // pred_region
      %124 = dma.done [#allocation3], 256
    $region45: #{tpu_custom_call.1} parent=1 // pred_fallthru
      _
    // Predicated region
    $region46: #{tpu_custom_call.1} parent=1 // pred_check
      _
    $region47: #{tpu_custom_call.1} parent=1 // pred_check_branch
      %126 = sbr.rel (0) target = $region49
    $region48: #{tpu_custom_call.1} parent=1 // pred_region
      %128 = dma.done [#allocation6], 512
    $region49: #{tpu_custom_call.1} parent=1 // pred_fallthru
      _
    // Predicated region
    $region50: #{tpu_custom_call.1} parent=1 // pred_check
      _
    $region51: #{tpu_custom_call.1} parent=1 // pred_check_branch
      %130 = sbr.rel (0) target = $region53
    $region52: #{tpu_custom_call.1} parent=1 // pred_region
      %132 = dma.done [#allocation6], 512
    $region53: #{tpu_custom_call.1} parent=1 // pred_fallthru
      _
    // Predicated region
    $region54: #{tpu_custom_call.1} parent=1 // pred_check
      _
    $region55: #{tpu_custom_call.1} parent=1 // pred_check_branch
      %134 = sbr.rel (0) target = $region57
    $region56: #{tpu_custom_call.1} parent=1 // pred_region
      %136 = dma.done [#allocation9], 512
    $region57: #{tpu_custom_call.1} parent=1 // pred_fallthru
      _
    // Predicated region
    $region58: #{tpu_custom_call.1} parent=1 // pred_check
      _
    $region59: #{tpu_custom_call.1} parent=1 // pred_check_branch
      %138 = sbr.rel (0) target = $region61
    $region60: #{tpu_custom_call.1} parent=1 // pred_region
      %140 = dma.done [#allocation9], 512
    $region61: #{tpu_custom_call.1} parent=1 // pred_fallthru
      _
    // Predicated region
    $region62: #{tpu_custom_call.1} parent=1 // pred_check
      _
    $region63: #{tpu_custom_call.1} parent=1 // pred_check_branch
      %142 = sbr.rel (0) target = $region65
    $region64: #{tpu_custom_call.1} parent=1 // pred_region
      %144 = dma.done [#allocation12], 512
    $region65: #{tpu_custom_call.1} parent=1 // pred_fallthru
      _
    // Predicated region
    $region66: #{tpu_custom_call.1} parent=1 // pred_check
      _
    $region67: #{tpu_custom_call.1} parent=1 // pred_check_branch
      %146 = sbr.rel (0) target = $region69
    $region68: #{tpu_custom_call.1} parent=1 // pred_region
      %148 = dma.done [#allocation12], 512
    $region69: #{tpu_custom_call.1} parent=1 // pred_fallthru
      _
    %v149 = vld [vmem:[#allocation2] sm:$0xff]
    %v150 = vld [vmem:[#allocation2 + $0x8] sm:$0xff]
    %v151 = vld [vmem:[#allocation5] sm:$0xff]
    %v152 = vld [vmem:[#allocation5 + $0x8] sm:$0xff]
    %v153 = vld [vmem:[#allocation5 + $0x10] sm:$0xff]
    %v154 = vld [vmem:[#allocation5 + $0x18] sm:$0xff]
    %vm155 = vcmask 261120
    %v157 = vsel %vm155, %v149, 0
    %v160 = vsel %vm155, %v150, 0
    %162 = vmatpush.msra.mxu0 0.0
    %163 = vmatpush.msra.mxu0 0.0
    %164 = vmatpush.msra.mxu0 0.0
    %165 = vmatpush.msra.mxu0 0.0
    %166 = vmatpush.msra.mxu0 0.0
    %167 = vmatpush.msra.mxu0 0.0
    %168 = vmatpush.msra.mxu0 0.0
    %169 = vmatpush.msra.mxu0 0.0
    %170 = vmatpush.msra.mxu0 0.0
    %171 = vmatpush.msra.mxu0 0.0
    %172 = vmatpush.msra.mxu0 0.0
    %173 = vmatpush.msra.mxu0 0.0
    %174 = vmatpush.msra.mxu0 %v154
    %175 = vmatpush.msra.mxu0 %v153
    %176 = vmatpush.msra.mxu0 %v152
    %177 = vmatpush.msra.mxu0 %v151
    %178 = vmatmul.f32.gmra.mxu0 %v157
    %v179 = vpop.f32.mrf.mxu0
    %v180 = vadd.f32 0.0, %v179
    %181 = vmatmul.f32.gmra.mxu0 %v160
    %v182 = vpop.f32.mrf.mxu0
    %v183 = vadd.f32 0.0, %v182
    %184 = vdwg.mxu0
    %v185 = vld [vmem:[#allocation10] sm:$0xff]
    %v186 = vld [vmem:[#allocation10 + $0x8] sm:$0xff]
    %v187 = vld [vmem:[#allocation10 + $0x10] sm:$0xff]
    %v188 = vld [vmem:[#allocation10 + $0x18] sm:$0xff]
    %v189 = vld [vmem:[%s7] sm:$0x1]
    %v191 = vperm.slane %v189, 0
    %v194 = vsel %vm155, %v180, 0
    %v197 = vsel %vm155, %v183, 0
    %199 = vmatpush.msra.mxu0 0.0
    %200 = vmatpush.msra.mxu0 0.0
    %201 = vmatpush.msra.mxu0 0.0
    %202 = vmatpush.msra.mxu0 0.0
    %203 = vmatpush.msra.mxu0 0.0
    %204 = vmatpush.msra.mxu0 0.0
    %205 = vmatpush.msra.mxu0 0.0
    %206 = vmatpush.msra.mxu0 0.0
    %207 = vmatpush.msra.mxu0 0.0
    %208 = vmatpush.msra.mxu0 0.0
    %209 = vmatpush.msra.mxu0 0.0
    %210 = vmatpush.msra.mxu0 0.0
    %211 = vmatpush.msra.mxu0 %v188
    %212 = vmatpush.msra.mxu0 %v187
    %213 = vmatpush.msra.mxu0 %v186
    %214 = vmatpush.msra.mxu0 %v185
    %215 = vmatmul.f32.gmra.mxu0 %v194
    %v216 = vpop.f32.mrf.mxu0
    %v217 = vadd.f32 %v191, %v216
    %218 = vmatmul.f32.gmra.mxu0 %v197
    %v219 = vpop.f32.mrf.mxu0
    %v220 = vadd.f32 %v191, %v219
    %221 = vdwg.mxu0
    %222 = vst.msk [vmem:[#allocation14] sm:$0xff] %vm155, %v217
    %223 = vst.msk [vmem:[#allocation14 + $0x8] sm:$0xff] %vm155, %v220
    %v224 = vld [vmem:[#allocation7] sm:$0xff]
    %v225 = vld [vmem:[#allocation7 + $0x8] sm:$0xff]
    %v226 = vld [vmem:[#allocation7 + $0x10] sm:$0xff]
    %v227 = vld [vmem:[#allocation7 + $0x18] sm:$0xff]
    %228 = vmatpush.msra.mxu0 0.0
    %229 = vmatpush.msra.mxu0 0.0
    %230 = vmatpush.msra.mxu0 0.0
    %231 = vmatpush.msra.mxu0 0.0
    %232 = vmatpush.msra.mxu0 0.0
    %233 = vmatpush.msra.mxu0 0.0
    %234 = vmatpush.msra.mxu0 0.0
    %235 = vmatpush.msra.mxu0 0.0
    %236 = vmatpush.msra.mxu0 0.0
    %237 = vmatpush.msra.mxu0 0.0
    %238 = vmatpush.msra.mxu0 0.0
    %239 = vmatpush.msra.mxu0 0.0
    %240 = vmatpush.msra.mxu0 %v227
    %241 = vmatpush.msra.mxu0 %v226
    %242 = vmatpush.msra.mxu0 %v225
    %243 = vmatpush.msra.mxu0 %v224
    %244 = vmatmul.f32.gmra.mxu0 %v157
    %v245 = vpop.f32.mrf.mxu0
    %v246 = vadd.f32 0.0, %v245
    %247 = vmatmul.f32.gmra.mxu0 %v160
    %v248 = vpop.f32.mrf.mxu0
    %v249 = vadd.f32 0.0, %v248
    %250 = vdwg.mxu0
    %v251 = vld [vmem:[#allocation11] sm:$0xff]
    %v252 = vld [vmem:[#allocation11 + $0x8] sm:$0xff]
    %v253 = vld [vmem:[#allocation11 + $0x10] sm:$0xff]
    %v254 = vld [vmem:[#allocation11 + $0x18] sm:$0xff]
    %v255 = vld [vmem:[%s8] sm:$0x1]
    %v257 = vperm.slane %v255, 0
    %v260 = vsel %vm155, %v246, 0
    %v263 = vsel %vm155, %v249, 0
    %265 = vmatpush.msra.mxu0 0.0
    %266 = vmatpush.msra.mxu0 0.0
    %267 = vmatpush.msra.mxu0 0.0
    %268 = vmatpush.msra.mxu0 0.0
    %269 = vmatpush.msra.mxu0 0.0
    %270 = vmatpush.msra.mxu0 0.0
    %271 = vmatpush.msra.mxu0 0.0
    %272 = vmatpush.msra.mxu0 0.0
    %273 = vmatpush.msra.mxu0 0.0
    %274 = vmatpush.msra.mxu0 0.0
    %275 = vmatpush.msra.mxu0 0.0
    %276 = vmatpush.msra.mxu0 0.0
    %277 = vmatpush.msra.mxu0 %v254
    %278 = vmatpush.msra.mxu0 %v253
    %279 = vmatpush.msra.mxu0 %v252
    %280 = vmatpush.msra.mxu0 %v251
    %281 = vmatmul.f32.gmra.mxu0 %v260
    %v282 = vpop.f32.mrf.mxu0
    %v283 = vadd.f32 %v257, %v282
    %284 = vmatmul.f32.gmra.mxu0 %v263
    %v285 = vpop.f32.mrf.mxu0
    %v286 = vadd.f32 %v257, %v285
    %287 = vdwg.mxu0
    %288 = vst.msk [vmem:[#allocation15] sm:$0xff] %vm155, %v283
    %289 = vst.msk [vmem:[#allocation15 + $0x8] sm:$0xff] %vm155, %v286
    %v290 = vld [vmem:[#allocation8] sm:$0xff]
    %v291 = vld [vmem:[#allocation8 + $0x8] sm:$0xff]
    %v292 = vld [vmem:[#allocation8 + $0x10] sm:$0xff]
    %v293 = vld [vmem:[#allocation8 + $0x18] sm:$0xff]
    %294 = vmatpush.msra.mxu0 0.0
    %295 = vmatpush.msra.mxu0 0.0
    %296 = vmatpush.msra.mxu0 0.0
    %297 = vmatpush.msra.mxu0 0.0
    %298 = vmatpush.msra.mxu0 0.0
    %299 = vmatpush.msra.mxu0 0.0
    %300 = vmatpush.msra.mxu0 0.0
    %301 = vmatpush.msra.mxu0 0.0
    %302 = vmatpush.msra.mxu0 0.0
    %303 = vmatpush.msra.mxu0 0.0
    %304 = vmatpush.msra.mxu0 0.0
    %305 = vmatpush.msra.mxu0 0.0
    %306 = vmatpush.msra.mxu0 %v293
    %307 = vmatpush.msra.mxu0 %v292
    %308 = vmatpush.msra.mxu0 %v291
    %309 = vmatpush.msra.mxu0 %v290
    %310 = vmatmul.f32.gmra.mxu0 %v157
    %v311 = vpop.f32.mrf.mxu0
    %v312 = vadd.f32 0.0, %v311
    %313 = vmatmul.f32.gmra.mxu0 %v160
    %v314 = vpop.f32.mrf.mxu0
    %v315 = vadd.f32 0.0, %v314
    %316 = vdwg.mxu0
    %v317 = vld [vmem:[#allocation13] sm:$0xff]
    %v318 = vld [vmem:[#allocation13 + $0x8] sm:$0xff]
    %v319 = vld [vmem:[#allocation13 + $0x10] sm:$0xff]
    %v320 = vld [vmem:[#allocation13 + $0x18] sm:$0xff]
    %v321 = vld [vmem:[%s9] sm:$0x1]
    %v323 = vperm.slane %v321, 0
    %v326 = vsel %vm155, %v312, 0
    %v329 = vsel %vm155, %v315, 0
    %331 = vmatpush.msra.mxu0 0.0
    %332 = vmatpush.msra.mxu0 0.0
    %333 = vmatpush.msra.mxu0 0.0
    %334 = vmatpush.msra.mxu0 0.0
    %335 = vmatpush.msra.mxu0 0.0
    %336 = vmatpush.msra.mxu0 0.0
    %337 = vmatpush.msra.mxu0 0.0
    %338 = vmatpush.msra.mxu0 0.0
    %339 = vmatpush.msra.mxu0 0.0
    %340 = vmatpush.msra.mxu0 0.0
    %341 = vmatpush.msra.mxu0 0.0
    %342 = vmatpush.msra.mxu0 0.0
    %343 = vmatpush.msra.mxu0 %v320
    %344 = vmatpush.msra.mxu0 %v319
    %345 = vmatpush.msra.mxu0 %v318
    %346 = vmatpush.msra.mxu0 %v317
    %347 = vmatmul.f32.gmra.mxu0 %v326
    %v348 = vpop.f32.mrf.mxu0
    %v349 = vadd.f32 %v323, %v348
    %350 = vmatmul.f32.gmra.mxu0 %v329
    %v351 = vpop.f32.mrf.mxu0
    %v352 = vadd.f32 %v323, %v351
    %353 = vdwg.mxu0
    %354 = vst.msk [vmem:[#allocation17] sm:$0xff] %vm155, %v349
    %355 = vst.msk [vmem:[#allocation17 + $0x8] sm:$0xff] %vm155, %v352
    // Predicated region
    $region70: #{tpu_custom_call.1} parent=1 // pred_check
      _
    $region71: #{tpu_custom_call.1} parent=1 // pred_check_branch
      %357 = sbr.rel (0) target = $region73
    $region72: #{tpu_custom_call.1} parent=1 // pred_region
      %359 = vsyncadd [#allocation4], 0
      %s360 = sshll.u32 [#allocation14], 4
      %s361 = int_to_ptr.vmem [resolvable:$true] %s360
      %s362 = sshll.u32 %s10, 4
      %s363 = int_to_ptr.hbm [resolvable:$true] %s362
      %368 = dma.vmem_to_hbm [thread:$0]  %s361, 256, %s363, [#allocation4], 128, 128, 8
    $region73: #{tpu_custom_call.1} parent=1 // pred_fallthru
      _
    // Predicated region
    $region74: #{tpu_custom_call.1} parent=1 // pred_check
      _
    $region75: #{tpu_custom_call.1} parent=1 // pred_check_branch
      %370 = sbr.rel (0) target = $region77
    $region76: #{tpu_custom_call.1} parent=1 // pred_region
      %372 = vsyncadd [#allocation16], 0
      %s373 = sshll.u32 [#allocation15], 4
      %s374 = int_to_ptr.vmem [resolvable:$true] %s373
      %s375 = sshll.u32 %s11, 4
      %s376 = int_to_ptr.hbm [resolvable:$true] %s375
      %381 = dma.vmem_to_hbm [thread:$0]  %s374, 256, %s376, [#allocation16], 128, 128, 8
    $region77: #{tpu_custom_call.1} parent=1 // pred_fallthru
      _
    // Predicated region
    $region78: #{tpu_custom_call.1} parent=1 // pred_check
      _
    $region79: #{tpu_custom_call.1} parent=1 // pred_check_branch
      %383 = sbr.rel (0) target = $region81
    $region80: #{tpu_custom_call.1} parent=1 // pred_region
      %385 = vsyncadd [#allocation16], 0
      %s386 = sshll.u32 [#allocation17], 4
      %s387 = int_to_ptr.vmem [resolvable:$true] %s386
      %s388 = sshll.u32 %s12, 4
      %s389 = int_to_ptr.hbm [resolvable:$true] %s388
      %394 = dma.vmem_to_hbm [thread:$0]  %s387, 256, %s389, [#allocation16], 128, 128, 8
    $region81: #{tpu_custom_call.1} parent=1 // pred_fallthru
      _
    // Predicated region
    $region82: #{tpu_custom_call.1} parent=1 // pred_check
      _
    $region83: #{tpu_custom_call.1} parent=1 // pred_check_branch
      %396 = sbr.rel (0) target = $region85
    $region84: #{tpu_custom_call.1} parent=1 // pred_region
      %398 = dma.done [#allocation4], 256
    $region85: #{tpu_custom_call.1} parent=1 // pred_fallthru
      _
    // Predicated region
    $region86: #{tpu_custom_call.1} parent=1 // pred_check
      _
    $region87: #{tpu_custom_call.1} parent=1 // pred_check_branch
      %400 = sbr.rel (0) target = $region89
    $region88: #{tpu_custom_call.1} parent=1 // pred_region
      %402 = dma.done [#allocation16], 256
    $region89: #{tpu_custom_call.1} parent=1 // pred_fallthru
      _
    // Predicated region
    $region90: #{tpu_custom_call.1} parent=1 // pred_check
      _
    $region91: #{tpu_custom_call.1} parent=1 // pred_check_branch
      %404 = sbr.rel (0) target = $region93
    $region92: #{tpu_custom_call.1} parent=1 // pred_region
      %406 = dma.done [#allocation16], 256
    $region93: #{tpu_custom_call.1} parent=1 // pred_fallthru
      _
    %407 = vsyncpa [#allocation3], 1
    %408 = vsyncpa [#allocation6], 1
    %409 = vsyncpa [#allocation9], 1
    %410 = vsyncpa [#allocation12], 1
    %411 = vsyncpa [#allocation4], 1
    %412 = vsyncpa [#allocation16], 1

</llo_original>
